<compile_context>
chip_gen: v6e
topology: v6e:2x2x1
jax: 0.10.0
libtpu: 0.0.40
codegen_flags: <defaults>
</compile_context>

<pallas_src>
import jax
import jax.numpy as jnp
from jax.experimental import pallas as pl
from jax.experimental.pallas import tpu as pltpu


# ----------------------------- Gabor filter bank (parameter setup, plain JAX) --
def gabor_kernel(a, w0, psi, ks):
    # a, w0: (order, nic, noc, 2); psi: (order, nic, noc)
    a = a[:, :, :, None, None, :]
    w0 = w0[:, :, :, None, None, :]
    psi = psi[:, :, :, None, None]
    i = jnp.arange(ks, dtype=jnp.float32)
    x = jnp.stack(jnp.meshgrid(i, i, indexing="ij"), axis=2)[None, None, ...]
    x0 = jnp.array([(ks - 1) / 2, (ks - 1) / 2], dtype=jnp.float32)[
        None, None, None, None, None, :]
    d = x - x0
    h = jnp.exp(-jnp.sum((a * d) ** 2, axis=-1)) * jnp.cos(
        jnp.sum(w0 * d, axis=-1) + psi)
    return h  # (order, nic, noc, ks, ks)


def get_filter(alpha, a, w0, psi, ks, transpose=False):
    if transpose:
        w0, psi = -w0, -psi
    return (alpha * gabor_kernel(a, w0, psi, ks)).sum(axis=0)  # (nic, noc, ks, ks)


# ----------------------------- Pallas hot path ---------------------------------
def _subpixel_matmul_kernel(w_ref, x_ref, o_ref):
    # w_ref: (R, K)  = (s^2*C_out, E^2*C_in)  VMEM-resident weight bank
    # x_ref: (K, mt) shared im2col tile; lane axis = flattened (b, qh, qw)
    # o_ref: (R, mt) lane-dense output tile (f32 MXU accumulation)
    o_ref[...] = jnp.dot(
        w_ref[...], x_ref[...], preferred_element_type=jnp.float32
    ).astype(o_ref.dtype)


def _round_up(a, b):
    return -(-a // b) * b


def _phase_shifts(ks, s, p):
    # Polyphase identity for conv_transpose2d:
    #   y[s*q + r] += x[q + (r + p - k)/s] * w[k]   for k ≡ (r + p) (mod s)
    # Union of input shifts used by any phase (per spatial dim).
    return sorted({(r + p - k) // s
                   for r in range(s) for k in range(ks)
                   if (r + p - k) % s == 0})


def _build_weight_bank(filt, s, p, shifts, dtype):
    # filt: (C_in, C_out, ks, ks) -> (s*s*C_out, E*E*C_in)
    # rows ordered (co, rh, rw), cols ordered (eh, ew, ci).
    # Phases that don't use a given shift simply get zero weight (tiny array).
    C_in, C_out, ks, _ = filt.shape
    E = len(shifts)
    wb = jnp.zeros((C_out, s, s, E, E, C_in), filt.dtype)
    for rh in range(s):
        for eh, dh in enumerate(shifts):
            kh = rh + p - s * dh
            if not 0 <= kh < ks:
                continue
            for rw in range(s):
                for ew, dw in enumerate(shifts):
                    kw = rw + p - s * dw
                    if not 0 <= kw < ks:
                        continue
                    wb = wb.at[:, rh, rw, eh, ew, :].set(filt[:, :, kh, kw].T)
    return wb.reshape(s * s * C_out, E * E * C_in).astype(dtype)


def _build_slab(x, shifts, dtype):
    # x: (B, C_in, H, W) -> shared im2col slab (E*E*C_in, B*H*W).
    # Columns ordered (b, qh, qw): batch folded into the lane-dense M axis.
    B, C_in, H, W = x.shape
    E = len(shifts)
    lo, hi = max(0, -min(shifts)), max(0, max(shifts))
    xp = jnp.pad(x.astype(dtype), ((0, 0), (0, 0), (lo, hi), (lo, hi)))
    taps = []
    for dh in shifts:
        for dw in shifts:
            taps.append(xp[:, :, lo + dh:lo + dh + H, lo + dw:lo + dw + W])
    slab = jnp.stack(taps, axis=0)         # (E*E, B, C_in, H, W)
    slab = slab.transpose(0, 2, 1, 3, 4)   # (E*E, C_in, B, H, W)
    return slab.reshape(E * E * C_in, B * H * W)


def conv_transpose2d_pallas(x, filt, stride, padding, ks, *,
                            m_tile=2048, operand_dtype=jnp.bfloat16,
                            vmem_budget_bytes=36 * 1024 * 1024):
    """F.conv_transpose2d(x, filt, padding=padding, stride=stride,
    output_padding=stride + 2*padding - ks), filt of shape (C_in, C_out, ks, ks),
    via the sub-pixel (pixel-shuffle) decomposition."""
    B, C_in, H, W = x.shape
    C_out = filt.shape[1]
    s, p = stride, padding
    # nn.ConvTranspose2d._output_padding(output_size = s*H) gives op = s+2p-ks
    # and (like torch) requires 0 <= op < s; other combos are rejected here too.
    op = s + 2 * p - ks
    assert 0 <= op < s, "output size stride*H not reachable with this ks/stride/pad"

    shifts = _phase_shifts(ks, s, p)
    E = len(shifts)
    R = s * s * C_out            # s^2 phases folded into the matmul row dim
    K = E * E * C_in             # shared (union-of-taps) contraction dim
    M = B * H * W                # batch folded into the lane-dense M axis

    wb = _build_weight_bank(filt, s, p, shifts, operand_dtype)   # (R, K)
    slab = _build_slab(x, shifts, operand_dtype)                 # (K, M)

    out_dtype = x.dtype
    in_b = jnp.dtype(operand_dtype).itemsize
    out_b = jnp.dtype(out_dtype).itemsize

    # ---- M tiling: large lane-dense tiles, capped by an explicit VMEM budget --
    def tile_vmem_bytes(mt_, w_bufs=1):
        return (2 * K * mt_ * in_b          # double-buffered slab tile
                + 2 * R * mt_ * out_b       # double-buffered output tile
                + w_bufs * R * K * in_b)    # resident weight bank

    mt = min(_round_up(m_tile, 128), _round_up(M, 128))
    while mt > 128 and tile_vmem_bytes(mt) > vmem_budget_bytes:
        mt = _round_up(mt // 2, 128)
    # v7x has 2 TensorCores: keep >= 2 parallel grid steps when the size allows.
    if mt >= 256 and -(-M // mt) < 2:
        mt = _round_up(-(-M // 2), 128)
    Mp = _round_up(M, mt)
    n_m = Mp // mt
    if Mp != M:
        slab = jnp.pad(slab, ((0, 0), (0, Mp - M)))

    cost = pl.CostEstimate(
        flops=2 * R * K * Mp,
        transcendentals=0,
        bytes_accessed=K * Mp * in_b + R * K * in_b + R * Mp * out_b)

    est = tile_vmem_bytes(mt, w_bufs=2)
    vmem_limit = None
    if est > (12 << 20):
        # Raise the scoped limit only when needed; 48 MiB is safe on v7x (64 MiB
        # physical) and well under v5e/v6e's 128 MiB.
        vmem_limit = min(max(int(est * 1.5), 32 << 20), 48 << 20)

    def run(weight_pipeline_mode):
        if weight_pipeline_mode is None:
            w_spec = pl.BlockSpec((R, K), lambda m: (0, 0))
        else:
            # constant index map -> fetched once; a single buffer halves the
            # weight-bank VMEM footprint (matters at production channel counts).
            w_spec = pl.BlockSpec((R, K), lambda m: (0, 0),
                                  pipeline_mode=weight_pipeline_mode)
        return pl.pallas_call(
            _subpixel_matmul_kernel,
            out_shape=jax.ShapeDtypeStruct((R, Mp), out_dtype),
            grid_spec=pltpu.PrefetchScalarGridSpec(
                num_scalar_prefetch=0,
                grid=(n_m,),
                in_specs=[
                    w_spec,
                    pl.BlockSpec((K, mt), lambda m: (0, m)),
                ],
                out_specs=pl.BlockSpec((R, mt), lambda m: (0, m)),
            ),
            compiler_params=pltpu.CompilerParams(
                dimension_semantics=("parallel",),
                vmem_limit_bytes=vmem_limit),
            cost_estimate=cost,
        )(wb, slab)

    try:
        out = run(pl.Buffered(1))
    except Exception:
        # pl.Buffered(1) not accepted on this version -> default double buffer.
        out = run(None)

    # ---- pixel-shuffle epilogue: (co, rh, rw, b, qh, qw) -> NCHW --------------
    # TODO(synk): interleave the rw phases on the lane axis inside the kernel to
    # remove this one extra XLA pass over the output.
    out = out[:, :M].reshape(C_out, s, s, B, H, W)
    y = out.transpose(3, 0, 4, 1, 5, 2).reshape(B, C_out, s * H, s * W)
    return y


# ----------------------------- Module ------------------------------------------
class ConvAdjoint2dGabor:
    def __init__(self, nic, noc, ks, stride=2, order=1, key=None):
        k1, k2, k3, k4 = jax.random.split(key, 4)
        # deterministic synthetic parameters (same shapes as the nn.Parameters)
        self.alpha = jax.random.normal(k1, (order, nic, noc, 1, 1), jnp.float32)
        self.a = jax.random.normal(k2, (order, nic, noc, 2), jnp.float32)
        self.w0 = jax.random.normal(k3, (order, nic, noc, 2), jnp.float32)
        self.psi = jax.random.normal(k4, (order, nic, noc), jnp.float32)
        self.order = order
        self.stride = stride
        self.ks = ks
        self.pad = (ks - 1) // 2

    def forward(self, x, *, operand_dtype=jnp.bfloat16):
        s, p, ks = self.stride, self.pad, self.ks
        filt = get_filter(self.alpha, self.a, self.w0, self.psi, ks)  # (nic,noc,ks,ks)
        return conv_transpose2d_pallas(x, filt, s, p, ks,
                                       operand_dtype=operand_dtype)


# ----------------------------- reference (sanity check only) -------------------
def reference_forward(x, filt, stride, padding, output_padding, ks):
    w = jnp.flip(filt, axis=(2, 3)).transpose(1, 0, 2, 3)  # (C_out, C_in, ks, ks)
    pb = ks - 1 - padding
    pa = ks - 1 - padding + output_padding
    return jax.lax.conv_general_dilated(
        x, w, window_strides=(1, 1),
        padding=[(pb, pa), (pb, pa)],
        lhs_dilation=(stride, stride),
        dimension_numbers=("NCHW", "OIHW", "NCHW"))


if __name__ == "__main__":
    key = jax.random.PRNGKey(0)
    kp, kx = jax.random.split(key)

    B, nic, noc, H, W = 2, 4, 6, 16, 16
    ks, stride, order = 3, 2, 2

    mod = ConvAdjoint2dGabor(nic, noc, ks, stride=stride, order=order, key=kp)
    x = jax.random.normal(kx, (B, nic, H, W), jnp.float32)

    y = mod.forward(x)                       # default bf16 operands, f32 accum
    y = jax.block_until_ready(y)
    assert y.shape == (B, noc, stride * H, stride * W), y.shape

    filt = get_filter(mod.alpha, mod.a, mod.w0, mod.psi, ks)
    op = stride + 2 * mod.pad - ks

    # bf16-operand path: compare against the f32 reference fed the SAME bf16-
    # quantized operands -> only accumulation-order differences remain.
    x_q = x.astype(jnp.bfloat16).astype(jnp.float32)
    filt_q = filt.astype(jnp.bfloat16).astype(jnp.float32)
    y_ref = reference_forward(x_q, filt_q, stride, mod.pad, op, ks)
    assert jnp.allclose(y, y_ref, atol=1e-2, rtol=1e-2), \
        float(jnp.max(jnp.abs(y - y_ref)))

    # f32-operand path: tight check against the exact f32 reference.
    y32 = mod.forward(x, operand_dtype=jnp.float32)
    y32 = jax.block_until_ready(y32)
    y_ref32 = reference_forward(x, filt, stride, mod.pad, op, ks)
    assert jnp.allclose(y32, y_ref32, atol=1e-4, rtol=1e-4), \
        float(jnp.max(jnp.abs(y32 - y_ref32)))

    print("KERNEL_OK")
</pallas_src>

<mosaic_0001>
module attributes {stable_mosaic.version = 11 : i64} {
  func.func @_subpixel_matmul_kernel(%arg0: i32, %arg1: memref<24x16xbf16, #tpu.memory_space<vmem>>, %arg2: memref<16x256xbf16, #tpu.memory_space<vmem>>, %arg3: memref<24x256xf32, #tpu.memory_space<vmem>>) attributes {dimension_semantics = [#tpu.dimension_semantics<parallel>], iteration_bounds = array<i64: 2>, scalar_prefetch = 0 : i64, scratch_operands = 0 : i64, tpu.core_type = #tpu.core_type<tc>, window_params = [{pipeline_mode = #tpu.pipeline_mode<synchronous>, transform_indices = @transform_0, window_bounds = array<i64: 24, 16>}, {transform_indices = @transform_1, window_bounds = array<i64: 16, 256>}, {transform_indices = @transform_2, window_bounds = array<i64: 24, 256>}]} {
    %c0 = arith.constant 0 : index
    %c0_0 = arith.constant 0 : index
    %0 = vector.load %arg1[%c0, %c0_0] : memref<24x16xbf16, #tpu.memory_space<vmem>>, vector<24x16xbf16>
    %c0_1 = arith.constant 0 : index
    %c0_2 = arith.constant 0 : index
    %1 = vector.load %arg2[%c0_1, %c0_2] : memref<16x256xbf16, #tpu.memory_space<vmem>>, vector<16x256xbf16>
    %cst = arith.constant dense<0.000000e+00> : vector<24x256xf32>
    %2 = tpu.matmul %0, %1, %cst {dimension_numbers = #tpu.dot_dimension_numbers<[1], [0], [0], [1], [0, 0, 1, 1], [], []>} : vector<24x16xbf16>, vector<16x256xbf16>, vector<24x256xf32> -> vector<24x256xf32>
    %c0_3 = arith.constant 0 : index
    %c0_4 = arith.constant 0 : index
    %3 = vector.load %arg3[%c0_3, %c0_4] : memref<24x256xf32, #tpu.memory_space<vmem>>, vector<24x256xf32>
    tpu.vector_store %arg3[%c0_3, %c0_4], %2 {strides = array<i32>} : memref<24x256xf32, #tpu.memory_space<vmem>>, vector<24x256xf32>,
    return
  }
  func.func @transform_0(%arg0: i32) -> (i32, i32) {
    %c0_i32 = arith.constant 0 : i32
    %c0_i32_0 = arith.constant 0 : i32
    %c0_i32_1 = arith.constant 0 : i32
    return %c0_i32, %c0_i32_0 : i32, i32
  }
  func.func @transform_1(%arg0: i32) -> (i32, i32) {
    %c0_i32 = arith.constant 0 : i32
    %c0_i32_0 = arith.constant 0 : i32
    return %c0_i32, %arg0 : i32, i32
  }
  func.func @transform_2(%arg0: i32) -> (i32, i32) {
    %c0_i32 = arith.constant 0 : i32
    %c0_i32_0 = arith.constant 0 : i32
    return %c0_i32, %arg0 : i32, i32
  }
}

module attributes {stable_mosaic.version = 11 : i64} {
  func.func @_subpixel_matmul_kernel(%arg0: i32, %arg1: memref<24x16xbf16, #tpu.memory_space<vmem>>, %arg2: memref<16x256xbf16, #tpu.memory_space<vmem>>, %arg3: memref<24x256xf32, #tpu.memory_space<vmem>>) attributes {dimension_semantics = [#tpu.dimension_semantics<parallel>], iteration_bounds = array<i64: 2>, scalar_prefetch = 0 : i64, scratch_operands = 0 : i64, tpu.core_type = #tpu.core_type<tc>, window_params = [{pipeline_mode = #tpu.pipeline_mode<synchronous>, transform_indices = @transform_0, window_bounds = array<i64: 24, 16>}, {transform_indices = @transform_1, window_bounds = array<i64: 16, 256>}, {transform_indices = @transform_2, window_bounds = array<i64: 24, 256>}]} {
    %c0 = arith.constant 0 : index
    %c0_0 = arith.constant 0 : index
    %0 = vector.load %arg1[%c0, %c0_0] : memref<24x16xbf16, #tpu.memory_space<vmem>>, vector<24x16xbf16>
    %c0_1 = arith.constant 0 : index
    %c0_2 = arith.constant 0 : index
    %1 = vector.load %arg2[%c0_1, %c0_2] : memref<16x256xbf16, #tpu.memory_space<vmem>>, vector<16x256xbf16>
    %cst = arith.constant dense<0.000000e+00> : vector<24x256xf32>
    %2 = tpu.matmul %0, %1, %cst {dimension_numbers = #tpu.dot_dimension_numbers<[1], [0], [0], [1], [0, 0, 1, 1], [], []>} : vector<24x16xbf16>, vector<16x256xbf16>, vector<24x256xf32> -> vector<24x256xf32>
    %c0_3 = arith.constant 0 : index
    %c0_4 = arith.constant 0 : index
    %3 = vector.load %arg3[%c0_3, %c0_4] : memref<24x256xf32, #tpu.memory_space<vmem>>, vector<24x256xf32>
    tpu.vector_store %arg3[%c0_3, %c0_4], %2 {strides = array<i32>} : memref<24x256xf32, #tpu.memory_space<vmem>>, vector<24x256xf32>,
    return
  }
  func.func @transform_0(%arg0: i32) -> (i32, i32) {
    %c0_i32 = arith.constant 0 : i32
    %c0_i32_0 = arith.constant 0 : i32
    %c0_i32_1 = arith.constant 0 : i32
    return %c0_i32, %c0_i32_0 : i32, i32
  }
  func.func @transform_1(%arg0: i32) -> (i32, i32) {
    %c0_i32 = arith.constant 0 : i32
    %c0_i32_0 = arith.constant 0 : i32
    return %c0_i32, %arg0 : i32, i32
  }
  func.func @transform_2(%arg0: i32) -> (i32, i32) {
    %c0_i32 = arith.constant 0 : i32
    %c0_i32_0 = arith.constant 0 : i32
    return %c0_i32, %arg0 : i32, i32
  }
}

</mosaic_0001>

<llo_original>
// kernel: tpu_custom_call.1
$region0: #{tpu_custom_call.1}
  #allocation0 [shape = 'u32[]', space=smem, size = 0x4, offset = 0x4, fixed_abs, tag = 'smem constant byte address 0x4 - core index']
  #allocation1 [shape = 'u32[144,128]{1,0:T(1,128)}', space=vmem, size = 0x12000, scoped, tag = 'internal scratch']
  %s0 = inlined_call_operand.vmem [shape: bf16[24,16], index: 0, kind: input, shape index: {}]
  %s1 = inlined_call_operand.hbm [shape: bf16[16,512], index: 1, kind: input, shape index: {}]
  %s2 = inlined_call_operand.hbm [shape: f32[24,512], index: 2, kind: output, shape index: {}]
  %s3 = sld [smem:[#allocation0]]
  $region45: #{tpu_custom_call.1} parent=0
    _
  %s5 = ssub.s32 1, %s3
  %s6 = scalar_select 0, %s5, %s3
  $region1: #{tpu_custom_call.1} parent=0
    #allocation2 [shape = 'u8[16384]{0}', space=vmem, size = 0x4000, scoped, tag = 'input window, operand 1']
    #allocation3 [shape = 's32[2]{0}', space=sflag, size = 0x8, scoped, tag = 'scoped memory for tpu_custom_call.1']
    #allocation4 [shape = 's32[2]{0}', space=sflag, size = 0x8, scoped, tag = 'scoped memory for tpu_custom_call.1']
    #allocation5 [shape = 'u8[49152]{0}', space=vmem, size = 0xc000, scoped, tag = 'output window, operand 0']
    %7 = vsyncpa [#allocation3], 0
    %s8 = scalar_lea.sflag [#allocation3], 1
    %9 = vsyncpa %s8, 0
    %10 = vsyncpa [#allocation4], 0
    %s11 = scalar_lea.sflag [#allocation4], 1
    %12 = vsyncpa %s11, 0
    loop: start=0, step=1, limit=4
    $region2: #{tpu_custom_call.1} parent=1 // loop_pre_header
      _
    $region3: #{tpu_custom_call.1} parent=1 // loop_header
      %s14 = sphi 0, %s18
      %p15 = scmp.ge.s32.totalorder %s14, 4
      %s22 = sphi 0, %s22
      %s24 = sphi 0, %s22
      %s25 = sphi 0, %s24
      %s39 = sphi 0, %s25
      %s45 = sphi 0, %s47
      %s48 = sphi 0, %s45
      %s49 = sphi 0, %s48
      %s65 = sphi 0, %s49
      %s71 = sphi 0, %s73
      %s74 = sphi 0, %s71
      %s75 = sphi 0, %s74
      %s91 = sphi 0, %s75
    $region4: #{tpu_custom_call.1} parent=1 // loop_header_branch
      %17 = sbr.rel (%p15) target = $region8
    $region5: #{tpu_custom_call.1} parent=1 // loop_body
      %s19 = ssub.s32 %s14, 1
      %s20 = ssub.s32 %s14, 2
      %s21 = sadd.s32 %s14, 1
      %s23 = sadd.s32 %s22, 1
      %p26 = scmp.eq.s32.totalorder %s14, 1
      %p27 = scmp.ne.s32.totalorder %s22, %s24
      %p28 = scmp.eq.s32.totalorder %s14, 0
      %p29 = por %p27, %p28
      %p30 = scmp.ne.s32.totalorder %s22, %s24
      %p31 = scmp.eq.s32.totalorder %s19, 1
      %p32 = por %p30, %p31
      %p33 = scmp.ne.s32.totalorder %s24, %s25
      %p34 = scmp.eq.s32.totalorder %s19, 0
      %p35 = por %p33, %p34
      %p36 = scmp.ne.s32.totalorder %s24, %s25
      %p37 = scmp.eq.s32.totalorder %s20, 1
      %p38 = por %p36, %p37
      %p40 = scmp.ne.s32.totalorder %s25, %s39
      %p41 = scmp.eq.s32.totalorder %s20, 0
      %p42 = por %p40, %p41
      %s43 = ssub.s32 %s14, %s21
      %p44 = scmp.eq.s32.totalorder %s43, 0
      %s46 = sadd.s32 %s45, 1
      %s47 = scalar_select %p44, %s45, %s46
      %p50 = pneg %p44
      %p51 = scmp.eq.s32.totalorder %s14, 1
      %p52 = por %p50, %p51
      %p53 = scmp.ne.s32.totalorder %s45, %s48
      %p54 = scmp.eq.s32.totalorder %s14, 0
      %p55 = por %p53, %p54
      %p56 = scmp.ne.s32.totalorder %s45, %s48
      %p57 = scmp.eq.s32.totalorder %s19, 1
      %p58 = por %p56, %p57
      %p59 = scmp.ne.s32.totalorder %s48, %s49
      %p60 = scmp.eq.s32.totalorder %s19, 0
      %p61 = por %p59, %p60
      %p62 = scmp.ne.s32.totalorder %s48, %s49
      %p63 = scmp.eq.s32.totalorder %s20, 1
      %p64 = por %p62, %p63
      %p66 = scmp.ne.s32.totalorder %s49, %s65
      %p67 = scmp.eq.s32.totalorder %s20, 0
      %p68 = por %p66, %p67
      %s69 = ssub.s32 %s14, %s21
      %p70 = scmp.eq.s32.totalorder %s69, 0
      %s72 = sadd.s32 %s71, 1
      %s73 = scalar_select %p70, %s71, %s72
      %p76 = pneg %p70
      %p77 = scmp.eq.s32.totalorder %s14, 1
      %p78 = por %p76, %p77
      %p79 = scmp.ne.s32.totalorder %s71, %s74
      %p80 = scmp.eq.s32.totalorder %s14, 0
      %p81 = por %p79, %p80
      %p82 = scmp.ne.s32.totalorder %s71, %s74
      %p83 = scmp.eq.s32.totalorder %s19, 1
      %p84 = por %p82, %p83
      %p85 = scmp.ne.s32.totalorder %s74, %s75
      %p86 = scmp.eq.s32.totalorder %s19, 0
      %p87 = por %p85, %p86
      %p88 = scmp.ne.s32.totalorder %s74, %s75
      %p89 = scmp.eq.s32.totalorder %s20, 1
      %p90 = por %p88, %p89
      %p92 = scmp.ne.s32.totalorder %s75, %s91
      %p93 = scmp.eq.s32.totalorder %s20, 0
      %p94 = por %p92, %p93
      %p95 = scmp.le.s32.totalorder 1, %s14
      %p96 = scmp.lt.s32.totalorder %s14, 3
      %p97 = pnand %p95, %p96
      %p98 = pneg %p97
      // Predicated region
      $region9: #{tpu_custom_call.1} parent=5 // pred_check
        _
      $region10: #{tpu_custom_call.1} parent=5 // pred_check_branch
        %100 = sbr.rel (%p97) target = $region12
      $region11: #{tpu_custom_call.1} parent=5 // pred_region
        %s101 = ssub.s32 %s14, 1
        // Predicated region
        $region13: #{tpu_custom_call.1} parent=11 // pred_check
          %p102 = pneg %p35
        $region14: #{tpu_custom_call.1} parent=11 // pred_check_branch
          %104 = sbr.rel (%p102) target = $region16
        $region15: #{tpu_custom_call.1} parent=11 // pred_region
          _
        $region16: #{tpu_custom_call.1} parent=11 // pred_fallthru
          _
      $region12: #{tpu_custom_call.1} parent=5 // pred_fallthru
        _
      %p105 = scmp.lt.s32.totalorder %s14, 2
      // Predicated region
      $region17: #{tpu_custom_call.1} parent=5 // pred_check
        %p106 = pneg %p105
      $region18: #{tpu_custom_call.1} parent=5 // pred_check_branch
        %108 = sbr.rel (%p106) target = $region20
      $region19: #{tpu_custom_call.1} parent=5 // pred_region
        // Predicated region
        $region21: #{tpu_custom_call.1} parent=19 // pred_check
          %p109 = pneg %p55
        $region22: #{tpu_custom_call.1} parent=19 // pred_check_branch
          %111 = sbr.rel (%p109) target = $region24
        $region23: #{tpu_custom_call.1} parent=19 // pred_region
          %s112 = sand.u32 %s45, 1
          %s113 = scalar_lea.sflag [#allocation3], %s112
          %s114 = sand.u32 %s45, 1
          %s115 = smul.addr %s114, 16
          %s116 = scalar_lea.vmem [#allocation2], %s115
          %s117 = smul.u32 2, %s14
          %s119 = ssub.s32 256, 256
          %120 = vsyncadd %s113, %s119
          %s121 = smul.addr %s117, 64
          %s122 = scalar_lea.hbm %s1, %s121
          %s123 = sshll.u32 %s116, 4
          %s124 = int_to_ptr.vmem [resolvable:$true] %s123
          %129 = dma.hbm_to_vmem [thread:$0]  %s122, 256, %s124, %s113, 256, 128, 8
        $region24: #{tpu_custom_call.1} parent=19 // pred_fallthru
          _
      $region20: #{tpu_custom_call.1} parent=5 // pred_fallthru
        _
      %p130 = scmp.le.s32.totalorder 1, %s14
      %p131 = scmp.lt.s32.totalorder %s14, 3
      %p132 = pnand %p130, %p131
      %p133 = pneg %p132
      // Predicated region
      $region25: #{tpu_custom_call.1} parent=5 // pred_check
        _
      $region26: #{tpu_custom_call.1} parent=5 // pred_check_branch
        %135 = sbr.rel (%p132) target = $region28
      $region27: #{tpu_custom_call.1} parent=5 // pred_region
        %s136 = ssub.s32 %s14, 1
        %s137 = sand.u32 %s48, 1
        %s138 = scalar_lea.sflag [#allocation3], %s137
        %s139 = sand.u32 %s48, 1
        %s140 = smul.addr %s139, 16
        %s141 = scalar_lea.vmem [#allocation2], %s140
        // Predicated region
        $region29: #{tpu_custom_call.1} parent=27 // pred_check
          %p142 = pneg %p61
        $region30: #{tpu_custom_call.1} parent=27 // pred_check_branch
          %144 = sbr.rel (%p142) target = $region32
        $region31: #{tpu_custom_call.1} parent=27 // pred_region
          %145 = dma.done %s138, 256
        $region32: #{tpu_custom_call.1} parent=27 // pred_fallthru
          _
        %p146 = pneg %p35
        %p147 = pneg %p32
        %s148 = sand.u32 %s48, 1
        %s149 = scalar_lea.sflag [#allocation3], %s148
        %s150 = sand.u32 %s48, 1
        %s151 = smul.addr %s150, 16
        %s152 = scalar_lea.vmem [#allocation2], %s151
        %p153 = pneg %p61
        %p154 = pneg %p58
        %p155 = pneg %p87
        %p156 = pneg %p84
        %s157 = sand.u32 %s74, 1
        %s158 = scalar_lea.sflag [#allocation4], %s157
        %s159 = sand.u32 %s74, 1
        %s160 = smul.addr %s159, 48
        %s161 = scalar_lea.vmem [#allocation5], %s160
        %s162 = smul.u32 2, %s19
        %s163 = smul.u32 2, %s19
        %v165 = vld [vmem:[%s0] sm:$0xf]
        %v166 = vld [vmem:[%s0 + $0x4] sm:$0xf]
        %v167 = vld [vmem:[%s0 + $0x8] sm:$0xf]
        %v168 = vld [vmem:[%s141] sm:$0xff]
        %v169 = vld [vmem:[%s141 + $0x8] sm:$0xff]
        %v173 = vunpack.c.l.b16 %v165
        %v174 = vunpack.c.l.b16 %v166
        %v175 = vunpack.c.l.b16 %v167
        %v176 = vpack.c.b16 %v174, %v173
        %v177 = vpack.c.b16 %v175, %v175
        %v180 = vunpack.c.l.b16 %v168
        %v181 = vunpack.c.h.b16 %v168
        %v182 = vunpack.c.l.b16 %v169
        %v183 = vunpack.c.h.b16 %v169
        %v184 = vpack.c.b16 %v182, %v180
        %v185 = vpack.c.b16 %v183, %v181
        %vm188 = vcmask 130048
        %v190 = vsel %vm188, %v176, 0
        %v193 = vsel %vm188, %v177, 0
        %195 = vmatprep.subr.bf16.mxu0 0
        %196 = vmatpush1.bf16.msra.mxu0 0
        %197 = vmatprep.subr.bf16.mxu0 0
        %198 = vmatpush1.bf16.msra.mxu0 0
        %199 = vmatprep.subr.bf16.mxu0 0
        %200 = vmatpush1.bf16.msra.mxu0 0
        %201 = vmatprep.subr.bf16.mxu0 0
        %202 = vmatpush1.bf16.msra.mxu0 0
        %203 = vmatprep.subr.bf16.mxu0 0
        %204 = vmatpush1.bf16.msra.mxu0 0
        %205 = vmatprep.subr.bf16.mxu0 0
        %206 = vmatpush1.bf16.msra.mxu0 0
        %207 = vmatprep.subr.bf16.mxu0 0
        %208 = vmatpush1.bf16.msra.mxu0 0
        %209 = vmatprep.subr.bf16.mxu0 %v185
        %210 = vmatpush1.bf16.msra.mxu0 %v184
        %211 = vmatprep.subr.bf16.mxu0 0
        %212 = vmatpush2.bf16.msra.mxu0 0
        %213 = vmatprep.subr.bf16.mxu0 0
        %214 = vmatpush2.bf16.msra.mxu0 0
        %215 = vmatprep.subr.bf16.mxu0 0
        %216 = vmatpush2.bf16.msra.mxu0 0
        %217 = vmatprep.subr.bf16.mxu0 0
        %218 = vmatpush2.bf16.msra.mxu0 0
        %219 = vmatprep.subr.bf16.mxu0 0
        %220 = vmatpush2.bf16.msra.mxu0 0
        %221 = vmatprep.subr.bf16.mxu0 0
        %222 = vmatpush2.bf16.msra.mxu0 0
        %223 = vmatprep.subr.bf16.mxu0 0
        %224 = vmatpush2.bf16.msra.mxu0 0
        %225 = vmatprep.subr.bf16.mxu0 0
        %226 = vmatpush2.bf16.msra.mxu0 0
        %227 = vmatprep.mubr.bf16.mxu0 0
        %228 = vmatmul.mubr.bf16.gmra.mxu0 %v190
        %v229 = vpop.f32.mrf.mxu0
        %v230 = vadd.f32 0.0, %v229
        %v231 = vpop.f32.mrf.mxu0
        %v232 = vadd.f32 0.0, %v231
        %v233 = vpop.f32.mrf.mxu0
        %v234 = vadd.f32 0.0, %v233
        %v235 = vpop.f32.mrf.mxu0
        %v236 = vadd.f32 0.0, %v235
        %237 = vmatprep.mubr.bf16.mxu0 0
        %238 = vmatmul.mubr.bf16.gmra.mxu0 %v193
        %v239 = vpop.f32.mrf.mxu0
        %v240 = vadd.f32 0.0, %v239
        %v241 = vpop.f32.mrf.mxu0
        %v242 = vadd.f32 0.0, %v241
        %v243 = vpop.f32.mrf.mxu0
        %v244 = vpop.f32.mrf.mxu0
        %245 = vdwg.mxu0
        %246 = vst [vmem:[%s161] sm:$0xff] %v230
        %247 = vst [vmem:[%s161 + $0x8] sm:$0xff] %v232
        %248 = vst [vmem:[%s161 + $0x10] sm:$0xff] %v234
        %249 = vst [vmem:[%s161 + $0x18] sm:$0xff] %v236
        %250 = vst [vmem:[%s161 + $0x20] sm:$0xff] %v240
        %251 = vst [vmem:[%s161 + $0x28] sm:$0xff] %v242
        %s252 = sand.u32 %s74, 1
        %s253 = scalar_lea.sflag [#allocation4], %s252
        %s254 = sand.u32 %s74, 1
        %s255 = smul.addr %s254, 48
        %s256 = scalar_lea.vmem [#allocation5], %s255
        // Predicated region
        $region33: #{tpu_custom_call.1} parent=27 // pred_check
          %p257 = pneg %p84
        $region34: #{tpu_custom_call.1} parent=27 // pred_check_branch
          %259 = sbr.rel (%p257) target = $region36
        $region35: #{tpu_custom_call.1} parent=27 // pred_region
          %s260 = smul.u32 2, %s19
          %s262 = ssub.s32 768, 768
          %263 = vsyncadd %s253, %s262
          %s264 = smul.addr %s260, 128
          %s265 = scalar_lea.hbm %s2, %s264
          %s266 = sshll.u32 %s256, 4
          %s267 = int_to_ptr.vmem [resolvable:$true] %s266
          %272 = dma.vmem_to_hbm [thread:$0]  %s267, 768, %s265, %s253, 256, 512, 16
        $region36: #{tpu_custom_call.1} parent=27 // pred_fallthru
          _
      $region28: #{tpu_custom_call.1} parent=5 // pred_fallthru
        _
      %p273 = scmp.le.s32.totalorder 2, %s14
      // Predicated region
      $region37: #{tpu_custom_call.1} parent=5 // pred_check
        %p274 = pneg %p273
      $region38: #{tpu_custom_call.1} parent=5 // pred_check_branch
        %276 = sbr.rel (%p274) target = $region40
      $region39: #{tpu_custom_call.1} parent=5 // pred_region
        %s277 = ssub.s32 %s14, 2
        // Predicated region
        $region41: #{tpu_custom_call.1} parent=39 // pred_check
          %p278 = pneg %p90
        $region42: #{tpu_custom_call.1} parent=39 // pred_check_branch
          %280 = sbr.rel (%p278) target = $region44
        $region43: #{tpu_custom_call.1} parent=39 // pred_region
          %s281 = sand.u32 %s75, 1
          %s282 = scalar_lea.sflag [#allocation4], %s281
          %s283 = sand.u32 %s75, 1
          %s284 = smul.addr %s283, 48
          %s285 = scalar_lea.vmem [#allocation5], %s284
          %286 = dma.done %s282, 768
        $region44: #{tpu_custom_call.1} parent=39 // pred_fallthru
          _
      $region40: #{tpu_custom_call.1} parent=5 // pred_fallthru
        _
    $region6: #{tpu_custom_call.1} parent=1 // loop_footer
      %s18 = sadd.s32 1, %s14
    $region7: #{tpu_custom_call.1} parent=1 // loop_footer_branch
      %13 = sbr.rel target = $region3
    $region8: #{tpu_custom_call.1} parent=1 // loop_exit
      _
    %287 = vsyncpa [#allocation3], 1
    %s288 = scalar_lea.sflag [#allocation3], 1
    %289 = vsyncpa %s288, 1
    %290 = vsyncpa [#allocation4], 1
    %s291 = scalar_lea.sflag [#allocation4], 1
    %292 = vsyncpa %s291, 1

// kernel: tpu_custom_call.1
$region0: #{tpu_custom_call.1}
  #allocation0 [shape = 'u32[]', space=smem, size = 0x4, offset = 0x4, fixed_abs, tag = 'smem constant byte address 0x4 - core index']
  #allocation1 [shape = 'u32[144,128]{1,0:T(1,128)}', space=vmem, size = 0x12000, scoped, tag = 'internal scratch']
  %s0 = inlined_call_operand.vmem [shape: bf16[24,16], index: 0, kind: input, shape index: {}]
  %s1 = inlined_call_operand.hbm [shape: bf16[16,512], index: 1, kind: input, shape index: {}]
  %s2 = inlined_call_operand.hbm [shape: f32[24,512], index: 2, kind: output, shape index: {}]
  %s3 = sld [smem:[#allocation0]]
  $region45: #{tpu_custom_call.1} parent=0
    _
  %s5 = ssub.s32 1, %s3
  %s6 = scalar_select 0, %s5, %s3
  $region1: #{tpu_custom_call.1} parent=0
    #allocation2 [shape = 'u8[16384]{0}', space=vmem, size = 0x4000, scoped, tag = 'input window, operand 1']
    #allocation3 [shape = 's32[2]{0}', space=sflag, size = 0x8, scoped, tag = 'scoped memory for tpu_custom_call.1']
    #allocation4 [shape = 's32[2]{0}', space=sflag, size = 0x8, scoped, tag = 'scoped memory for tpu_custom_call.1']
    #allocation5 [shape = 'u8[49152]{0}', space=vmem, size = 0xc000, scoped, tag = 'output window, operand 0']
    %7 = vsyncpa [#allocation3], 0
    %s8 = scalar_lea.sflag [#allocation3], 1
    %9 = vsyncpa %s8, 0
    %10 = vsyncpa [#allocation4], 0
    %s11 = scalar_lea.sflag [#allocation4], 1
    %12 = vsyncpa %s11, 0
    loop: start=0, step=1, limit=4
    $region2: #{tpu_custom_call.1} parent=1 // loop_pre_header
      _
    $region3: #{tpu_custom_call.1} parent=1 // loop_header
      %s14 = sphi 0, %s18
      %p15 = scmp.ge.s32.totalorder %s14, 4
      %s22 = sphi 0, %s22
      %s24 = sphi 0, %s22
      %s25 = sphi 0, %s24
      %s39 = sphi 0, %s25
      %s45 = sphi 0, %s47
      %s48 = sphi 0, %s45
      %s49 = sphi 0, %s48
      %s65 = sphi 0, %s49
      %s71 = sphi 0, %s73
      %s74 = sphi 0, %s71
      %s75 = sphi 0, %s74
      %s91 = sphi 0, %s75
    $region4: #{tpu_custom_call.1} parent=1 // loop_header_branch
      %17 = sbr.rel (%p15) target = $region8
    $region5: #{tpu_custom_call.1} parent=1 // loop_body
      %s19 = ssub.s32 %s14, 1
      %s20 = ssub.s32 %s14, 2
      %s21 = sadd.s32 %s14, 1
      %s23 = sadd.s32 %s22, 1
      %p26 = scmp.eq.s32.totalorder %s14, 1
      %p27 = scmp.ne.s32.totalorder %s22, %s24
      %p28 = scmp.eq.s32.totalorder %s14, 0
      %p29 = por %p27, %p28
      %p30 = scmp.ne.s32.totalorder %s22, %s24
      %p31 = scmp.eq.s32.totalorder %s19, 1
      %p32 = por %p30, %p31
      %p33 = scmp.ne.s32.totalorder %s24, %s25
      %p34 = scmp.eq.s32.totalorder %s19, 0
      %p35 = por %p33, %p34
      %p36 = scmp.ne.s32.totalorder %s24, %s25
      %p37 = scmp.eq.s32.totalorder %s20, 1
      %p38 = por %p36, %p37
      %p40 = scmp.ne.s32.totalorder %s25, %s39
      %p41 = scmp.eq.s32.totalorder %s20, 0
      %p42 = por %p40, %p41
      %s43 = ssub.s32 %s14, %s21
      %p44 = scmp.eq.s32.totalorder %s43, 0
      %s46 = sadd.s32 %s45, 1
      %s47 = scalar_select %p44, %s45, %s46
      %p50 = pneg %p44
      %p51 = scmp.eq.s32.totalorder %s14, 1
      %p52 = por %p50, %p51
      %p53 = scmp.ne.s32.totalorder %s45, %s48
      %p54 = scmp.eq.s32.totalorder %s14, 0
      %p55 = por %p53, %p54
      %p56 = scmp.ne.s32.totalorder %s45, %s48
      %p57 = scmp.eq.s32.totalorder %s19, 1
      %p58 = por %p56, %p57
      %p59 = scmp.ne.s32.totalorder %s48, %s49
      %p60 = scmp.eq.s32.totalorder %s19, 0
      %p61 = por %p59, %p60
      %p62 = scmp.ne.s32.totalorder %s48, %s49
      %p63 = scmp.eq.s32.totalorder %s20, 1
      %p64 = por %p62, %p63
      %p66 = scmp.ne.s32.totalorder %s49, %s65
      %p67 = scmp.eq.s32.totalorder %s20, 0
      %p68 = por %p66, %p67
      %s69 = ssub.s32 %s14, %s21
      %p70 = scmp.eq.s32.totalorder %s69, 0
      %s72 = sadd.s32 %s71, 1
      %s73 = scalar_select %p70, %s71, %s72
      %p76 = pneg %p70
      %p77 = scmp.eq.s32.totalorder %s14, 1
      %p78 = por %p76, %p77
      %p79 = scmp.ne.s32.totalorder %s71, %s74
      %p80 = scmp.eq.s32.totalorder %s14, 0
      %p81 = por %p79, %p80
      %p82 = scmp.ne.s32.totalorder %s71, %s74
      %p83 = scmp.eq.s32.totalorder %s19, 1
      %p84 = por %p82, %p83
      %p85 = scmp.ne.s32.totalorder %s74, %s75
      %p86 = scmp.eq.s32.totalorder %s19, 0
      %p87 = por %p85, %p86
      %p88 = scmp.ne.s32.totalorder %s74, %s75
      %p89 = scmp.eq.s32.totalorder %s20, 1
      %p90 = por %p88, %p89
      %p92 = scmp.ne.s32.totalorder %s75, %s91
      %p93 = scmp.eq.s32.totalorder %s20, 0
      %p94 = por %p92, %p93
      %p95 = scmp.le.s32.totalorder 1, %s14
      %p96 = scmp.lt.s32.totalorder %s14, 3
      %p97 = pnand %p95, %p96
      %p98 = pneg %p97
      // Predicated region
      $region9: #{tpu_custom_call.1} parent=5 // pred_check
        _
      $region10: #{tpu_custom_call.1} parent=5 // pred_check_branch
        %100 = sbr.rel (%p97) target = $region12
      $region11: #{tpu_custom_call.1} parent=5 // pred_region
        %s101 = ssub.s32 %s14, 1
        // Predicated region
        $region13: #{tpu_custom_call.1} parent=11 // pred_check
          %p102 = pneg %p35
        $region14: #{tpu_custom_call.1} parent=11 // pred_check_branch
          %104 = sbr.rel (%p102) target = $region16
        $region15: #{tpu_custom_call.1} parent=11 // pred_region
          _
        $region16: #{tpu_custom_call.1} parent=11 // pred_fallthru
          _
      $region12: #{tpu_custom_call.1} parent=5 // pred_fallthru
        _
      %p105 = scmp.lt.s32.totalorder %s14, 2
      // Predicated region
      $region17: #{tpu_custom_call.1} parent=5 // pred_check
        %p106 = pneg %p105
      $region18: #{tpu_custom_call.1} parent=5 // pred_check_branch
        %108 = sbr.rel (%p106) target = $region20
      $region19: #{tpu_custom_call.1} parent=5 // pred_region
        // Predicated region
        $region21: #{tpu_custom_call.1} parent=19 // pred_check
          %p109 = pneg %p55
        $region22: #{tpu_custom_call.1} parent=19 // pred_check_branch
          %111 = sbr.rel (%p109) target = $region24
        $region23: #{tpu_custom_call.1} parent=19 // pred_region
          %s112 = sand.u32 %s45, 1
          %s113 = scalar_lea.sflag [#allocation3], %s112
          %s114 = sand.u32 %s45, 1
          %s115 = smul.addr %s114, 16
          %s116 = scalar_lea.vmem [#allocation2], %s115
          %s117 = smul.u32 2, %s14
          %s119 = ssub.s32 256, 256
          %120 = vsyncadd %s113, %s119
          %s121 = smul.addr %s117, 64
          %s122 = scalar_lea.hbm %s1, %s121
          %s123 = sshll.u32 %s116, 4
          %s124 = int_to_ptr.vmem [resolvable:$true] %s123
          %129 = dma.hbm_to_vmem [thread:$0]  %s122, 256, %s124, %s113, 256, 128, 8
        $region24: #{tpu_custom_call.1} parent=19 // pred_fallthru
          _
      $region20: #{tpu_custom_call.1} parent=5 // pred_fallthru
        _
      %p130 = scmp.le.s32.totalorder 1, %s14
      %p131 = scmp.lt.s32.totalorder %s14, 3
      %p132 = pnand %p130, %p131
      %p133 = pneg %p132
      // Predicated region
      $region25: #{tpu_custom_call.1} parent=5 // pred_check
        _
      $region26: #{tpu_custom_call.1} parent=5 // pred_check_branch
        %135 = sbr.rel (%p132) target = $region28
      $region27: #{tpu_custom_call.1} parent=5 // pred_region
        %s136 = ssub.s32 %s14, 1
        %s137 = sand.u32 %s48, 1
        %s138 = scalar_lea.sflag [#allocation3], %s137
        %s139 = sand.u32 %s48, 1
        %s140 = smul.addr %s139, 16
        %s141 = scalar_lea.vmem [#allocation2], %s140
        // Predicated region
        $region29: #{tpu_custom_call.1} parent=27 // pred_check
          %p142 = pneg %p61
        $region30: #{tpu_custom_call.1} parent=27 // pred_check_branch
          %144 = sbr.rel (%p142) target = $region32
        $region31: #{tpu_custom_call.1} parent=27 // pred_region
          %145 = dma.done %s138, 256
        $region32: #{tpu_custom_call.1} parent=27 // pred_fallthru
          _
        %p146 = pneg %p35
        %p147 = pneg %p32
        %s148 = sand.u32 %s48, 1
        %s149 = scalar_lea.sflag [#allocation3], %s148
        %s150 = sand.u32 %s48, 1
        %s151 = smul.addr %s150, 16
        %s152 = scalar_lea.vmem [#allocation2], %s151
        %p153 = pneg %p61
        %p154 = pneg %p58
        %p155 = pneg %p87
        %p156 = pneg %p84
        %s157 = sand.u32 %s74, 1
        %s158 = scalar_lea.sflag [#allocation4], %s157
        %s159 = sand.u32 %s74, 1
        %s160 = smul.addr %s159, 48
        %s161 = scalar_lea.vmem [#allocation5], %s160
        %s162 = smul.u32 2, %s19
        %s163 = smul.u32 2, %s19
        %v165 = vld [vmem:[%s0] sm:$0xf]
        %v166 = vld [vmem:[%s0 + $0x4] sm:$0xf]
        %v167 = vld [vmem:[%s0 + $0x8] sm:$0xf]
        %v168 = vld [vmem:[%s141] sm:$0xff]
        %v169 = vld [vmem:[%s141 + $0x8] sm:$0xff]
        %v173 = vunpack.c.l.b16 %v165
        %v174 = vunpack.c.l.b16 %v166
        %v175 = vunpack.c.l.b16 %v167
        %v176 = vpack.c.b16 %v174, %v173
        %v177 = vpack.c.b16 %v175, %v175
        %v180 = vunpack.c.l.b16 %v168
        %v181 = vunpack.c.h.b16 %v168
        %v182 = vunpack.c.l.b16 %v169
        %v183 = vunpack.c.h.b16 %v169
        %v184 = vpack.c.b16 %v182, %v180
        %v185 = vpack.c.b16 %v183, %v181
        %vm188 = vcmask 130048
        %v190 = vsel %vm188, %v176, 0
        %v193 = vsel %vm188, %v177, 0
        %195 = vmatprep.subr.bf16.mxu0 0
        %196 = vmatpush1.bf16.msra.mxu0 0
        %197 = vmatprep.subr.bf16.mxu0 0
        %198 = vmatpush1.bf16.msra.mxu0 0
        %199 = vmatprep.subr.bf16.mxu0 0
        %200 = vmatpush1.bf16.msra.mxu0 0
        %201 = vmatprep.subr.bf16.mxu0 0
        %202 = vmatpush1.bf16.msra.mxu0 0
        %203 = vmatprep.subr.bf16.mxu0 0
        %204 = vmatpush1.bf16.msra.mxu0 0
        %205 = vmatprep.subr.bf16.mxu0 0
        %206 = vmatpush1.bf16.msra.mxu0 0
        %207 = vmatprep.subr.bf16.mxu0 0
        %208 = vmatpush1.bf16.msra.mxu0 0
        %209 = vmatprep.subr.bf16.mxu0 %v185
        %210 = vmatpush1.bf16.msra.mxu0 %v184
        %211 = vmatprep.subr.bf16.mxu0 0
        %212 = vmatpush2.bf16.msra.mxu0 0
        %213 = vmatprep.subr.bf16.mxu0 0
        %214 = vmatpush2.bf16.msra.mxu0 0
        %215 = vmatprep.subr.bf16.mxu0 0
        %216 = vmatpush2.bf16.msra.mxu0 0
        %217 = vmatprep.subr.bf16.mxu0 0
        %218 = vmatpush2.bf16.msra.mxu0 0
        %219 = vmatprep.subr.bf16.mxu0 0
        %220 = vmatpush2.bf16.msra.mxu0 0
        %221 = vmatprep.subr.bf16.mxu0 0
        %222 = vmatpush2.bf16.msra.mxu0 0
        %223 = vmatprep.subr.bf16.mxu0 0
        %224 = vmatpush2.bf16.msra.mxu0 0
        %225 = vmatprep.subr.bf16.mxu0 0
        %226 = vmatpush2.bf16.msra.mxu0 0
        %227 = vmatprep.mubr.bf16.mxu0 0
        %228 = vmatmul.mubr.bf16.gmra.mxu0 %v190
        %v229 = vpop.f32.mrf.mxu0
        %v230 = vadd.f32 0.0, %v229
        %v231 = vpop.f32.mrf.mxu0
        %v232 = vadd.f32 0.0, %v231
        %v233 = vpop.f32.mrf.mxu0
        %v234 = vadd.f32 0.0, %v233
        %v235 = vpop.f32.mrf.mxu0
        %v236 = vadd.f32 0.0, %v235
        %237 = vmatprep.mubr.bf16.mxu0 0
        %238 = vmatmul.mubr.bf16.gmra.mxu0 %v193
        %v239 = vpop.f32.mrf.mxu0
        %v240 = vadd.f32 0.0, %v239
        %v241 = vpop.f32.mrf.mxu0
        %v242 = vadd.f32 0.0, %v241
        %v243 = vpop.f32.mrf.mxu0
        %v244 = vpop.f32.mrf.mxu0
        %245 = vdwg.mxu0
        %246 = vst [vmem:[%s161] sm:$0xff] %v230
        %247 = vst [vmem:[%s161 + $0x8] sm:$0xff] %v232
        %248 = vst [vmem:[%s161 + $0x10] sm:$0xff] %v234
        %249 = vst [vmem:[%s161 + $0x18] sm:$0xff] %v236
        %250 = vst [vmem:[%s161 + $0x20] sm:$0xff] %v240
        %251 = vst [vmem:[%s161 + $0x28] sm:$0xff] %v242
        %s252 = sand.u32 %s74, 1
        %s253 = scalar_lea.sflag [#allocation4], %s252
        %s254 = sand.u32 %s74, 1
        %s255 = smul.addr %s254, 48
        %s256 = scalar_lea.vmem [#allocation5], %s255
        // Predicated region
        $region33: #{tpu_custom_call.1} parent=27 // pred_check
          %p257 = pneg %p84
        $region34: #{tpu_custom_call.1} parent=27 // pred_check_branch
          %259 = sbr.rel (%p257) target = $region36
        $region35: #{tpu_custom_call.1} parent=27 // pred_region
          %s260 = smul.u32 2, %s19
          %s262 = ssub.s32 768, 768
          %263 = vsyncadd %s253, %s262
          %s264 = smul.addr %s260, 128
          %s265 = scalar_lea.hbm %s2, %s264
          %s266 = sshll.u32 %s256, 4
          %s267 = int_to_ptr.vmem [resolvable:$true] %s266
          %272 = dma.vmem_to_hbm [thread:$0]  %s267, 768, %s265, %s253, 256, 512, 16
        $region36: #{tpu_custom_call.1} parent=27 // pred_fallthru
          _
      $region28: #{tpu_custom_call.1} parent=5 // pred_fallthru
        _
      %p273 = scmp.le.s32.totalorder 2, %s14
      // Predicated region
      $region37: #{tpu_custom_call.1} parent=5 // pred_check
        %p274 = pneg %p273
      $region38: #{tpu_custom_call.1} parent=5 // pred_check_branch
        %276 = sbr.rel (%p274) target = $region40
      $region39: #{tpu_custom_call.1} parent=5 // pred_region
        %s277 = ssub.s32 %s14, 2
        // Predicated region
        $region41: #{tpu_custom_call.1} parent=39 // pred_check
          %p278 = pneg %p90
        $region42: #{tpu_custom_call.1} parent=39 // pred_check_branch
          %280 = sbr.rel (%p278) target = $region44
        $region43: #{tpu_custom_call.1} parent=39 // pred_region
          %s281 = sand.u32 %s75, 1
          %s282 = scalar_lea.sflag [#allocation4], %s281
          %s283 = sand.u32 %s75, 1
          %s284 = smul.addr %s283, 48
          %s285 = scalar_lea.vmem [#allocation5], %s284
          %286 = dma.done %s282, 768
        $region44: #{tpu_custom_call.1} parent=39 // pred_fallthru
          _
      $region40: #{tpu_custom_call.1} parent=5 // pred_fallthru
        _
    $region6: #{tpu_custom_call.1} parent=1 // loop_footer
      %s18 = sadd.s32 1, %s14
    $region7: #{tpu_custom_call.1} parent=1 // loop_footer_branch
      %13 = sbr.rel target = $region3
    $region8: #{tpu_custom_call.1} parent=1 // loop_exit
      _
    %287 = vsyncpa [#allocation3], 1
    %s288 = scalar_lea.sflag [#allocation3], 1
    %289 = vsyncpa %s288, 1
    %290 = vsyncpa [#allocation4], 1
    %s291 = scalar_lea.sflag [#allocation4], 1
    %292 = vsyncpa %s291, 1

</llo_original>
